<compile_context>
chip_gen: v7x
topology: tpu7x:2x2x1
jax: 0.10.0
libtpu: 0.0.40
codegen_flags: <defaults>
</compile_context>

<pallas_src>
import functools

import numpy as np
import jax
import jax.numpy as jnp
from jax.experimental import pallas as pl
from jax.experimental.pallas import tpu as pltpu

SUBLANE = 8
LANE = 128
_FOLDED_W_BYTE_LIMIT = 8 << 20   # refuse to fold convs larger than this (f32 bytes)


# --------------------------------------------------------------------------
# Offline weight preparation (host-side, once): fold im2col + conv GEMMs into
# two dense matrices, fold the NCHW->NHWC image permutation into W1's rows,
# and permute the fc image rows to channels-last order.
# --------------------------------------------------------------------------

def _conv_out(n, k, stride, pad):
    return (n + 2 * pad - k) // stride + 1


def _im2col_selector(H, W, C, k, stride, pad, input_layout):
    """0/1 matrix S of shape (H*W*C, Ho*Wo*C*k*k) mapping a flattened feature
    map (row order given by `input_layout`) to flattened im2col patches
    (patch-major; (ci, kh, kw) inside, matching PyTorch's Conv2d weight
    flatten order)."""
    assert input_layout in ("NCHW", "NHWC")
    Ho, Wo = _conv_out(H, k, stride, pad), _conv_out(W, k, stride, pad)
    K = C * k * k
    S = np.zeros((H * W * C, Ho * Wo * K), np.float32)
    for oh in range(Ho):
        for ow in range(Wo):
            p = oh * Wo + ow
            for ci in range(C):
                for kh in range(k):
                    for kw in range(k):
                        ih = oh * stride + kh - pad
                        iw = ow * stride + kw - pad
                        if 0 <= ih < H and 0 <= iw < W:
                            if input_layout == "NCHW":
                                r = ci * (H * W) + ih * W + iw
                            else:
                                r = (ih * W + iw) * C + ci
                            S[r, p * K + ci * k * k + kh * k + kw] = 1.0
    return S, Ho, Wo


def _blockdiag_conv(w, b, Ho, Wo):
    """Block-diagonal GEMM form of a conv applied at Ho*Wo patch positions.
    w: (Co, Ci, k, k) PyTorch layout -> ((Ho*Wo)*Ci*k*k, (Ho*Wo)*Co).
    Output columns are in NHWC flatten order (oh, ow, co)."""
    w = np.asarray(w, np.float32)
    b = np.asarray(b, np.float32)
    Co, Ci, k, _ = w.shape
    K, P = Ci * k * k, Ho * Wo
    w2d = w.reshape(Co, K).T                       # (K, Co)
    Wbd = np.zeros((P * K, P * Co), np.float32)
    for p in range(P):
        Wbd[p * K:(p + 1) * K, p * Co:(p + 1) * Co] = w2d
    bt = np.tile(b, P)                             # index p*Co + co -> b[co]
    return Wbd, bt


def prepare_dense_weights(params, img_size, kernel_size, stride, padding,
                          embed_dim, mlp_last_dim, compute_dtype=jnp.bfloat16):
    """Build the kernel-facing matrices.  MXU operands are stored in
    `compute_dtype` (bf16 for the fast path, f32 for the tight numerics
    check); biases and the fc head weights stay f32."""
    assert len(params["cnn"]) == 2 and len(params["mlp"]) == 2
    (w1, b1), (w2, b2) = params["cnn"]
    C1, C2 = int(w1.shape[0]), int(w2.shape[0])

    # conv1: raw NCHW-flattened image (plain reshape, no transpose) ->
    #        NHWC-flattened conv1 activation.  The layout permutation is
    #        folded into the selector's rows.
    S0, H1, W1sp = _im2col_selector(img_size, img_size, 3, kernel_size, stride,
                                    padding, input_layout="NCHW")
    Wbd1, b1t = _blockdiag_conv(w1, b1, H1, W1sp)
    W1_eff = S0 @ Wbd1                              # (3*H*W, H1*W1*C1)

    # conv2: NHWC conv1 activation -> NHWC-flattened image features
    S1, H2, W2sp = _im2col_selector(H1, W1sp, C1, kernel_size, stride,
                                    padding, input_layout="NHWC")
    Wbd2, b2t = _blockdiag_conv(w2, b2, H2, W2sp)
    W2_eff = S1 @ Wbd2                              # (H1*W1*C1, H2*W2*C2)

    for name, w in (("W1_eff", W1_eff), ("W2_eff", W2_eff)):
        # TODO(synk): past this size the folded conv matrix must be K-tiled
        # (grid axis over K + VMEM accumulator) or replaced by a per-layer
        # conv path; it would not fit v7x's 64 MiB VMEM at larger img_size.
        assert w.size * 4 <= _FOLDED_W_BYTE_LIMIT, (
            f"{name} ({w.shape}) too large for the fused single-block path")

    # fc weight: split into GMF / MLP / image blocks; permute image rows from
    # PyTorch's NCHW flatten (c, h, w) to the kernel's NHWC flatten (h, w, c).
    fc_w = np.asarray(params["fc_w"], np.float32)[:, 0]    # (224,)
    fc_b = np.asarray(params["fc_b"], np.float32).reshape(1, 1)
    E, Dm = embed_dim, mlp_last_dim
    w_g = fc_w[:E]
    w_m = fc_w[E:E + Dm]
    w_i_nchw = fc_w[E + Dm:]
    perm = np.array([c * (H2 * W2sp) + h * W2sp + w
                     for h in range(H2) for w in range(W2sp) for c in range(C2)],
                    np.int32)
    w_i = w_i_nchw[perm]

    cdt, f32 = compute_dtype, jnp.float32
    return dict(
        w1=jnp.asarray(W1_eff, cdt), b1=jnp.asarray(b1t, f32).reshape(1, -1),
        w2=jnp.asarray(W2_eff, cdt), b2=jnp.asarray(b2t, f32).reshape(1, -1),
        wm1=jnp.asarray(params["mlp"][0][0], cdt),
        bm1=jnp.asarray(params["mlp"][0][1], f32).reshape(1, -1),
        wm2=jnp.asarray(params["mlp"][1][0], cdt),
        bm2=jnp.asarray(params["mlp"][1][1], f32).reshape(1, -1),
        wg=jnp.asarray(w_g, f32).reshape(1, -1),
        wm=jnp.asarray(w_m, f32).reshape(1, -1),
        wi=jnp.asarray(w_i, f32).reshape(1, -1),
        bfc=jnp.asarray(fc_b, f32),
    )


# --------------------------------------------------------------------------
# The single fused Pallas kernel
# --------------------------------------------------------------------------

def _ncf_fused_kernel(embed_dim, img_ref, emb_ref,
                      w1_ref, b1_ref, w2_ref, b2_ref,
                      wm1_ref, bm1_ref, wm2_ref, bm2_ref,
                      wg_ref, wm_ref, wi_ref, bfc_ref, o_ref):
    f32 = jnp.float32
    cdt = w1_ref.dtype                      # MXU operand dtype (bf16 or f32)

    # --- CNN branch: both convs as lane-dense GEMMs (channels-last) ---------
    a1 = jnp.dot(img_ref[...], w1_ref[...], preferred_element_type=f32) + b1_ref[...]
    a1 = jnp.maximum(a1, 0.0)                                  # (Bp, 256)
    imf = jnp.dot(a1.astype(cdt), w2_ref[...], preferred_element_type=f32) + b2_ref[...]
    imf = jnp.maximum(imf, 0.0)                                # (Bp, 128) image feats

    # --- MLP branch on flattened embeddings ---------------------------------
    h = jnp.dot(emb_ref[...], wm1_ref[...], preferred_element_type=f32) + bm1_ref[...]
    h = jnp.maximum(h, 0.0)
    h = jnp.dot(h.astype(cdt), wm2_ref[...], preferred_element_type=f32) + bm2_ref[...]
    h = jnp.maximum(h, 0.0)                                    # (Bp, 64)

    # --- GMF from the embedding lanes: user = [0:E], item = [E:2E] ----------
    e = emb_ref[...].astype(f32)
    gmf = e[:, :embed_dim] * e[:, embed_dim:2 * embed_dim]     # (Bp, E)

    # --- fc head: VPU multiplies + lane reductions (no N=1 MXU dots) --------
    y = jnp.sum(gmf * wg_ref[...], axis=-1, keepdims=True)
    y = y + jnp.sum(h * wm_ref[...], axis=-1, keepdims=True)
    y = y + jnp.sum(imf * wi_ref[...], axis=-1, keepdims=True)
    y = y + bfc_ref[0, 0]                                      # fc bias from SMEM
    # Lane-dense (Bp, 128) store (unmasked); padded rows carry garbage and are
    # sliced off by the wrapper (out[:B, 0]).
    o_ref[...] = jnp.broadcast_to(y, o_ref.shape)


def ncf_fused_forward(dense, x_idx, images, embedding, field_dims, embed_dim):
    B = int(x_idx.shape[0])
    cdt = dense["w1"].dtype
    # Pad batch rows to the compute-dtype sublane multiple (8 for f32, 16 bf16).
    row_mult = SUBLANE * max(1, 4 // cdt.itemsize)
    Bp = max(row_mult, ((B + row_mult - 1) // row_mult) * row_mult)

    # Plain-JAX producers: embedding gather + flatten + row pad.  No transpose:
    # the NCHW->NHWC permutation lives in W1's rows.
    offsets = np.concatenate(([0], np.cumsum(field_dims)[:-1])).astype(np.int32)
    idx = x_idx + jnp.asarray(offsets)[None, :]
    emb = jnp.take(embedding, idx, axis=0)                     # (B, 2, E)
    emb_flat = emb.reshape(B, -1)                              # user | item lanes
    img_flat = images.reshape(B, -1)                           # NCHW flatten

    def pad_rows(a):
        return jnp.pad(a, ((0, Bp - B), (0, 0))).astype(cdt)

    args = (pad_rows(img_flat), pad_rows(emb_flat),
            dense["w1"], dense["b1"], dense["w2"], dense["b2"],
            dense["wm1"], dense["bm1"], dense["wm2"], dense["bm2"],
            dense["wg"], dense["wm"], dense["wi"], dense["bfc"])

    # No grid: whole-array VMEM residents (single buffer, no pipeline
    # prologue/epilogue); the fc bias scalar goes through SMEM.
    in_specs = [pl.BlockSpec(memory_space=pltpu.MemorySpace.VMEM)
                for _ in range(len(args) - 1)]
    in_specs.append(pl.BlockSpec(memory_space=pltpu.MemorySpace.SMEM))

    d_img = args[0].shape[1]
    flops = 2 * Bp * (d_img * dense["w1"].shape[1]
                      + dense["w1"].shape[1] * dense["w2"].shape[1]
                      + dense["wm1"].shape[0] * dense["wm1"].shape[1]
                      + dense["wm2"].shape[0] * dense["wm2"].shape[1])
    bytes_accessed = sum(int(np.prod(a.shape)) * a.dtype.itemsize for a in args) \
        + Bp * LANE * 4

    out = pl.pallas_call(
        functools.partial(_ncf_fused_kernel, embed_dim),
        out_shape=jax.ShapeDtypeStruct((Bp, LANE), jnp.float32),
        in_specs=in_specs,
        out_specs=pl.BlockSpec(memory_space=pltpu.MemorySpace.VMEM),
        compiler_params=pltpu.CompilerParams(vmem_limit_bytes=32 << 20),
        cost_estimate=pl.CostEstimate(flops=int(flops), transcendentals=0,
                                      bytes_accessed=int(bytes_accessed)),
    )(*args)
    return out[:B, 0]                                          # matches .squeeze(1)


# --------------------------------------------------------------------------
# Parameter init (PyTorch-style layouts) and a pure-JAX reference
# --------------------------------------------------------------------------

def init_params(key, field_dims, embed_dim, mlp_dims, channel_list, kernel_size,
                img_flat_dim):
    keys = iter(jax.random.split(key, 64))
    params = {}
    total = int(sum(field_dims))
    params["embedding"] = 0.1 * jax.random.normal(
        next(keys), (total, embed_dim), jnp.float32)

    mlp = []
    in_dim = len(field_dims) * embed_dim
    for d in mlp_dims:
        w = jax.random.normal(next(keys), (in_dim, d), jnp.float32) / np.sqrt(in_dim)
        b = 0.01 * jax.random.normal(next(keys), (d,), jnp.float32)
        mlp.append((w, b))
        in_dim = d
    params["mlp"] = mlp

    cnn = []
    c_in = 3
    for c_out in channel_list:
        fan_in = c_in * kernel_size * kernel_size
        w = jax.random.normal(
            next(keys), (c_out, c_in, kernel_size, kernel_size), jnp.float32
        ) / np.sqrt(fan_in)
        b = 0.01 * jax.random.normal(next(keys), (c_out,), jnp.float32)
        cnn.append((w, b))
        c_in = c_out
    params["cnn"] = cnn

    fc_in = embed_dim + mlp_dims[-1] + img_flat_dim
    assert fc_in == 32 + 64 + 128, "dims must match the module's hardcoded fc"
    params["fc_w"] = jax.random.normal(next(keys), (fc_in, 1), jnp.float32) / np.sqrt(fc_in)
    params["fc_b"] = 0.01 * jax.random.normal(next(keys), (1,), jnp.float32)
    return params


def ncf_reference(params, x_idx, images, field_dims, stride, padding):
    """Pure-JAX mirror of the PyTorch forward (NCHW, concat + fc), run at
    HIGHEST precision so it serves as ground truth for both kernel variants."""
    HI = jax.lax.Precision.HIGHEST
    B = x_idx.shape[0]
    offsets = np.concatenate(([0], np.cumsum(field_dims)[:-1])).astype(np.int32)
    idx = x_idx + jnp.asarray(offsets)[None, :]
    emb = jnp.take(params["embedding"], idx, axis=0)
    user_x, item_x = emb[:, 0, :], emb[:, 1, :]
    gmf = user_x * item_x
    h = emb.reshape(B, -1)
    for w, b in params["mlp"]:
        h = jax.nn.relu(jnp.dot(h, w, precision=HI) + b)
    img = images
    for w, b in params["cnn"]:
        img = jax.lax.conv_general_dilated(
            img, w, window_strides=(stride, stride),
            padding=[(padding, padding), (padding, padding)],
            dimension_numbers=("NCHW", "OIHW", "NCHW"), precision=HI)
        img = jax.nn.relu(img + b[None, :, None, None])
    img_feat = img.reshape(B, -1)                              # NCHW flatten
    feat = jnp.concatenate([gmf, h, img_feat], axis=1)
    return (jnp.dot(feat, params["fc_w"], precision=HI) + params["fc_b"])[:, 0]


# --------------------------------------------------------------------------

if __name__ == "__main__":
    # Sizes so that gmf(32) + mlp(64) + image_features(128) == 224, matching
    # the module's hardcoded nn.Linear(32 + 64 + 128, 1).
    field_dims = [10, 20]          # [n_users, n_items]
    embed_dim = 32
    mlp_dims = (64, 64)
    channel_list = [4, 8]
    kernel_size, stride, padding = 3, 2, 1
    img_size = 16                  # 16 -> 8 -> 4 spatially; 8 * 4 * 4 = 128
    B = 2

    key = jax.random.PRNGKey(0)
    k_param, k_u, k_i, k_img = jax.random.split(key, 4)

    params = init_params(
        k_param, field_dims, embed_dim, mlp_dims, channel_list, kernel_size,
        img_flat_dim=channel_list[-1] * (img_size // 4) * (img_size // 4))

    x_idx = jnp.stack(
        [jax.random.randint(k_u, (B,), 0, field_dims[0]),
         jax.random.randint(k_i, (B,), 0, field_dims[1])], axis=1
    ).astype(jnp.int32)                                        # (B, 2)
    images = jax.random.normal(k_img, (B, 3, img_size, img_size), jnp.float32)

    ref = jax.block_until_ready(
        ncf_reference(params, x_idx, images, field_dims, stride, padding))

    # 1) f32 weights: tight numerics check (catches folding / permutation bugs
    #    that the bf16 tolerance could hide).
    dense_f32 = prepare_dense_weights(params, img_size, kernel_size, stride,
                                      padding, embed_dim, mlp_dims[-1],
                                      compute_dtype=jnp.float32)
    out_f32 = jax.block_until_ready(
        ncf_fused_forward(dense_f32, x_idx, images, params["embedding"],
                          field_dims, embed_dim))
    assert out_f32.shape == (B,) and out_f32.dtype == jnp.float32
    assert np.allclose(np.asarray(out_f32), np.asarray(ref),
                       rtol=5e-3, atol=5e-3), (out_f32, ref)

    # 2) bf16 weights + activations (fast path): halves the dominant W1 DMA and
    #    runs the MXU at native rate; f32 accumulation keeps it within bf16
    #    rounding tolerance of the reference.
    dense_bf16 = prepare_dense_weights(params, img_size, kernel_size, stride,
                                       padding, embed_dim, mlp_dims[-1],
                                       compute_dtype=jnp.bfloat16)
    out = jax.block_until_ready(
        ncf_fused_forward(dense_bf16, x_idx, images, params["embedding"],
                          field_dims, embed_dim))
    assert out.shape == (B,) and out.dtype == jnp.float32
    assert np.allclose(np.asarray(out), np.asarray(ref),
                       rtol=5e-2, atol=5e-2), (out, ref)

    print("KERNEL_OK")
</pallas_src>

<mosaic_0001>
module attributes {stable_mosaic.version = 11 : i64} {
  func.func @_ncf_fused_kernel(%arg0: memref<8x768xf32, #tpu.memory_space<vmem>>, %arg1: memref<8x64xf32, #tpu.memory_space<vmem>>, %arg2: memref<768x256xf32, #tpu.memory_space<vmem>>, %arg3: memref<1x256xf32, #tpu.memory_space<vmem>>, %arg4: memref<256x128xf32, #tpu.memory_space<vmem>>, %arg5: memref<1x128xf32, #tpu.memory_space<vmem>>, %arg6: memref<64x64xf32, #tpu.memory_space<vmem>>, %arg7: memref<1x64xf32, #tpu.memory_space<vmem>>, %arg8: memref<64x64xf32, #tpu.memory_space<vmem>>, %arg9: memref<1x64xf32, #tpu.memory_space<vmem>>, %arg10: memref<1x32xf32, #tpu.memory_space<vmem>>, %arg11: memref<1x64xf32, #tpu.memory_space<vmem>>, %arg12: memref<1x128xf32, #tpu.memory_space<vmem>>, %arg13: memref<1x1xf32, #tpu.memory_space<smem>>, %arg14: memref<8x128xf32, #tpu.memory_space<vmem>>) attributes {dimension_semantics = [], scalar_prefetch = 0 : i64, scratch_operands = 0 : i64, tpu.core_type = #tpu.core_type<tc>} {
    %c0 = arith.constant 0 : index
    %c0_0 = arith.constant 0 : index
    %0 = vector.load %arg0[%c0, %c0_0] : memref<8x768xf32, #tpu.memory_space<vmem>>, vector<8x768xf32>
    %c0_1 = arith.constant 0 : index
    %c0_2 = arith.constant 0 : index
    %1 = vector.load %arg2[%c0_1, %c0_2] : memref<768x256xf32, #tpu.memory_space<vmem>>, vector<768x256xf32>
    %cst = arith.constant dense<0.000000e+00> : vector<8x256xf32>
    %2 = tpu.matmul %0, %1, %cst {dimension_numbers = #tpu.dot_dimension_numbers<[1], [0], [0], [1], [0, 0, 1, 1], [], []>} : vector<8x768xf32>, vector<768x256xf32>, vector<8x256xf32> -> vector<8x256xf32>
    %c0_3 = arith.constant 0 : index
    %c0_4 = arith.constant 0 : index
    %3 = vector.load %arg3[%c0_3, %c0_4] : memref<1x256xf32, #tpu.memory_space<vmem>>, vector<1x256xf32>
    %4 = vector.broadcast %3 : vector<1x256xf32> to vector<8x256xf32>
    %5 = arith.addf %2, %4 : vector<8x256xf32>
    %cst_5 = arith.constant 0.000000e+00 : f32
    %6 = vector.broadcast %cst_5 : f32 to vector<8x256xf32>
    %7 = arith.maximumf %5, %6 : vector<8x256xf32>
    %c0_6 = arith.constant 0 : index
    %c0_7 = arith.constant 0 : index
    %8 = vector.load %arg4[%c0_6, %c0_7] : memref<256x128xf32, #tpu.memory_space<vmem>>, vector<256x128xf32>
    %cst_8 = arith.constant dense<0.000000e+00> : vector<8x128xf32>
    %9 = tpu.matmul %7, %8, %cst_8 {dimension_numbers = #tpu.dot_dimension_numbers<[1], [0], [0], [1], [0, 0, 1, 1], [], []>} : vector<8x256xf32>, vector<256x128xf32>, vector<8x128xf32> -> vector<8x128xf32>
    %c0_9 = arith.constant 0 : index
    %c0_10 = arith.constant 0 : index
    %10 = vector.load %arg5[%c0_9, %c0_10] : memref<1x128xf32, #tpu.memory_space<vmem>>, vector<1x128xf32>
    %11 = vector.broadcast %10 : vector<1x128xf32> to vector<8x128xf32>
    %12 = arith.addf %9, %11 : vector<8x128xf32>
    %cst_11 = arith.constant 0.000000e+00 : f32
    %13 = vector.broadcast %cst_11 : f32 to vector<8x128xf32>
    %14 = arith.maximumf %12, %13 : vector<8x128xf32>
    %c0_12 = arith.constant 0 : index
    %c0_13 = arith.constant 0 : index
    %15 = vector.load %arg1[%c0_12, %c0_13] : memref<8x64xf32, #tpu.memory_space<vmem>>, vector<8x64xf32>
    %c0_14 = arith.constant 0 : index
    %c0_15 = arith.constant 0 : index
    %16 = vector.load %arg6[%c0_14, %c0_15] : memref<64x64xf32, #tpu.memory_space<vmem>>, vector<64x64xf32>
    %cst_16 = arith.constant dense<0.000000e+00> : vector<8x64xf32>
    %17 = tpu.matmul %15, %16, %cst_16 {dimension_numbers = #tpu.dot_dimension_numbers<[1], [0], [0], [1], [0, 0, 1, 1], [], []>} : vector<8x64xf32>, vector<64x64xf32>, vector<8x64xf32> -> vector<8x64xf32>
    %c0_17 = arith.constant 0 : index
    %c0_18 = arith.constant 0 : index
    %18 = vector.load %arg7[%c0_17, %c0_18] : memref<1x64xf32, #tpu.memory_space<vmem>>, vector<1x64xf32>
    %19 = vector.broadcast %18 : vector<1x64xf32> to vector<8x64xf32>
    %20 = arith.addf %17, %19 : vector<8x64xf32>
    %cst_19 = arith.constant 0.000000e+00 : f32
    %21 = vector.broadcast %cst_19 : f32 to vector<8x64xf32>
    %22 = arith.maximumf %20, %21 : vector<8x64xf32>
    %c0_20 = arith.constant 0 : index
    %c0_21 = arith.constant 0 : index
    %23 = vector.load %arg8[%c0_20, %c0_21] : memref<64x64xf32, #tpu.memory_space<vmem>>, vector<64x64xf32>
    %cst_22 = arith.constant dense<0.000000e+00> : vector<8x64xf32>
    %24 = tpu.matmul %22, %23, %cst_22 {dimension_numbers = #tpu.dot_dimension_numbers<[1], [0], [0], [1], [0, 0, 1, 1], [], []>} : vector<8x64xf32>, vector<64x64xf32>, vector<8x64xf32> -> vector<8x64xf32>
    %c0_23 = arith.constant 0 : index
    %c0_24 = arith.constant 0 : index
    %25 = vector.load %arg9[%c0_23, %c0_24] : memref<1x64xf32, #tpu.memory_space<vmem>>, vector<1x64xf32>
    %26 = vector.broadcast %25 : vector<1x64xf32> to vector<8x64xf32>
    %27 = arith.addf %24, %26 : vector<8x64xf32>
    %cst_25 = arith.constant 0.000000e+00 : f32
    %28 = vector.broadcast %cst_25 : f32 to vector<8x64xf32>
    %29 = arith.maximumf %27, %28 : vector<8x64xf32>
    %c0_26 = arith.constant 0 : index
    %c0_27 = arith.constant 0 : index
    %30 = vector.load %arg1[%c0_26, %c0_27] : memref<8x64xf32, #tpu.memory_space<vmem>>, vector<8x64xf32>
    %31 = vector.extract_strided_slice %30 {offsets = [0, 0], sizes = [8, 32], strides = [1, 1]} : vector<8x64xf32> to vector<8x32xf32>
    %32 = vector.extract_strided_slice %30 {offsets = [0, 32], sizes = [8, 32], strides = [1, 1]} : vector<8x64xf32> to vector<8x32xf32>
    %33 = arith.mulf %31, %32 : vector<8x32xf32>
    %c0_28 = arith.constant 0 : index
    %c0_29 = arith.constant 0 : index
    %34 = vector.load %arg10[%c0_28, %c0_29] : memref<1x32xf32, #tpu.memory_space<vmem>>, vector<1x32xf32>
    %35 = vector.broadcast %34 : vector<1x32xf32> to vector<8x32xf32>
    %36 = arith.mulf %33, %35 : vector<8x32xf32>
    %cst_30 = arith.constant dense<0.000000e+00> : vector<8xf32>
    %37 = vector.multi_reduction <add>, %36, %cst_30 [1] : vector<8x32xf32> to vector<8xf32>
    %38 = vector.shape_cast %37 : vector<8xf32> to vector<8x1xf32>
    %c0_31 = arith.constant 0 : index
    %c0_32 = arith.constant 0 : index
    %39 = vector.load %arg11[%c0_31, %c0_32] : memref<1x64xf32, #tpu.memory_space<vmem>>, vector<1x64xf32>
    %40 = vector.broadcast %39 : vector<1x64xf32> to vector<8x64xf32>
    %41 = arith.mulf %29, %40 : vector<8x64xf32>
    %cst_33 = arith.constant dense<0.000000e+00> : vector<8xf32>
    %42 = vector.multi_reduction <add>, %41, %cst_33 [1] : vector<8x64xf32> to vector<8xf32>
    %43 = vector.shape_cast %42 : vector<8xf32> to vector<8x1xf32>
    %44 = arith.addf %38, %43 : vector<8x1xf32>
    %c0_34 = arith.constant 0 : index
    %c0_35 = arith.constant 0 : index
    %45 = vector.load %arg12[%c0_34, %c0_35] : memref<1x128xf32, #tpu.memory_space<vmem>>, vector<1x128xf32>
    %46 = vector.broadcast %45 : vector<1x128xf32> to vector<8x128xf32>
    %47 = arith.mulf %14, %46 : vector<8x128xf32>
    %cst_36 = arith.constant dense<0.000000e+00> : vector<8xf32>
    %48 = vector.multi_reduction <add>, %47, %cst_36 [1] : vector<8x128xf32> to vector<8xf32>
    %49 = vector.shape_cast %48 : vector<8xf32> to vector<8x1xf32>
    %50 = arith.addf %44, %49 : vector<8x1xf32>
    %c0_37 = arith.constant 0 : index
    %c0_38 = arith.constant 0 : index
    %51 = memref.load %arg13[%c0_37, %c0_38] : memref<1x1xf32, #tpu.memory_space<smem>>
    %52 = vector.broadcast %51 : f32 to vector<8x1xf32>
    %53 = arith.addf %50, %52 : vector<8x1xf32>
    %54 = vector.shape_cast %53 : vector<8x1xf32> to vector<8x1xf32>
    %55 = vector.broadcast %54 : vector<8x1xf32> to vector<8x128xf32>
    %c0_39 = arith.constant 0 : index
    %c0_40 = arith.constant 0 : index
    %56 = vector.load %arg14[%c0_39, %c0_40] : memref<8x128xf32, #tpu.memory_space<vmem>>, vector<8x128xf32>
    tpu.vector_store %arg14[%c0_39, %c0_40], %55 {strides = array<i32>} : memref<8x128xf32, #tpu.memory_space<vmem>>, vector<8x128xf32>,
    return
  }
}

</mosaic_0001>

<llo_original>
// kernel: tpu_custom_call.1
$region0: #{tpu_custom_call.1}
  #allocation0 [shape = 'u32[]', space=smem, size = 0x4, offset = 0x4, fixed_abs, tag = 'smem constant byte address 0x4 - core index']
  #allocation1 [shape = 'u32[144,128]{1,0:T(1,128)}', space=vmem, size = 0x12000, scoped, tag = 'internal scratch']
  #allocation2 [shape = 'f32[1,1]{1,0:T(1,128)S(6)}', space=smem, size = 0x200, scoped, tag = 'scoped memory for tpu_custom_call.1']
  %s0 = inlined_call_operand.hbm [shape: f32[8,768], index: 0, kind: input, shape index: {}]
  %s1 = inlined_call_operand.hbm [shape: f32[8,64], index: 1, kind: input, shape index: {}]
  %s2 = inlined_call_operand.hbm [shape: f32[768,256], index: 2, kind: input, shape index: {}]
  %s3 = inlined_call_operand.vmem [shape: f32[1,256], index: 3, kind: input, shape index: {}]
  %s4 = inlined_call_operand.hbm [shape: f32[256,128], index: 4, kind: input, shape index: {}]
  %s5 = inlined_call_operand.vmem [shape: f32[1,128], index: 5, kind: input, shape index: {}]
  %s6 = inlined_call_operand.hbm [shape: f32[64,64], index: 6, kind: input, shape index: {}]
  %s7 = inlined_call_operand.vmem [shape: f32[1,64], index: 7, kind: input, shape index: {}]
  %s8 = inlined_call_operand.hbm [shape: f32[64,64], index: 8, kind: input, shape index: {}]
  %s9 = inlined_call_operand.vmem [shape: f32[1,64], index: 9, kind: input, shape index: {}]
  %s10 = inlined_call_operand.vmem [shape: f32[1,32], index: 10, kind: input, shape index: {}]
  %s11 = inlined_call_operand.vmem [shape: f32[1,64], index: 11, kind: input, shape index: {}]
  %s12 = inlined_call_operand.vmem [shape: f32[1,128], index: 12, kind: input, shape index: {}]
  %s13 = inlined_call_operand.<no memory space> [shape: f32[1,1], index: 13, kind: input, shape index: {}]
  %s14 = inlined_call_operand.hbm [shape: f32[8,128], index: 14, kind: output, shape index: {}]
  %s15 = sld [smem:[#allocation0]]
  $region90: #{tpu_custom_call.1} parent=0
    _
  %s17 = ssub.s32 1, %s15
  %s18 = scalar_select 0, %s17, %s15
  %19 = sst [smem:[#allocation2]] %s13
  $region1: #{tpu_custom_call.1} parent=0
    #allocation3 [shape = 'u8[24576]{0}', space=vmem, size = 0x6000, scoped, tag = 'input window, operand 0, single buffered']
    #allocation4 [shape = 's32[1]{0}', space=sflag, size = 0x4, scoped, tag = 'scoped memory for tpu_custom_call.1']
    #allocation5 [shape = 's32[1]{0}', space=sflag, size = 0x4, scoped, tag = 'scoped memory for tpu_custom_call.1']
    #allocation6 [shape = 'u8[4096]{0}', space=vmem, size = 0x1000, scoped, tag = 'input window, operand 1, single buffered']
    #allocation7 [shape = 's32[1]{0}', space=sflag, size = 0x4, scoped, tag = 'scoped memory for tpu_custom_call.1']
    #allocation8 [shape = 'u8[786432]{0}', space=vmem, size = 0xc0000, scoped, tag = 'input window, operand 2, single buffered']
    #allocation9 [shape = 'u8[131072]{0}', space=vmem, size = 0x20000, scoped, tag = 'input window, operand 4, single buffered']
    #allocation10 [shape = 's32[1]{0}', space=sflag, size = 0x4, scoped, tag = 'scoped memory for tpu_custom_call.1']
    #allocation11 [shape = 'u8[32768]{0}', space=vmem, size = 0x8000, scoped, tag = 'input window, operand 6, single buffered']
    #allocation12 [shape = 'u8[32768]{0}', space=vmem, size = 0x8000, scoped, tag = 'input window, operand 8, single buffered']
    #allocation13 [shape = 's32[1]{0}', space=sflag, size = 0x4, scoped, tag = 'scoped memory for tpu_custom_call.1']
    #allocation14 [shape = 'u8[4096]{0}', space=vmem, size = 0x1000, scoped, tag = 'output window, operand 0, single buffered']
    %20 = vsyncpa [#allocation4], 0
    %21 = vsyncpa [#allocation7], 0
    %22 = vsyncpa [#allocation10], 0
    %23 = vsyncpa [#allocation13], 0
    %24 = vsyncpa [#allocation5], 0
    // Predicated region
    $region2: #{tpu_custom_call.1} parent=1 // pred_check
      _
    $region3: #{tpu_custom_call.1} parent=1 // pred_check_branch
      %26 = sbr.rel (0) target = $region5
    $region4: #{tpu_custom_call.1} parent=1 // pred_region
      %s28 = ssub.s32 768, 768
      %29 = vsyncadd [#allocation4], %s28
      %s31 = sshll.u32 [#allocation3], 4
      %s32 = int_to_ptr.vmem [resolvable:$true] %s31
      %34 = dma.hbm_to_vmem [thread:$0]  %s0, 768, %s32, [#allocation4]
    $region5: #{tpu_custom_call.1} parent=1 // pred_fallthru
      _
    // Predicated region
    $region6: #{tpu_custom_call.1} parent=1 // pred_check
      _
    $region7: #{tpu_custom_call.1} parent=1 // pred_check_branch
      %36 = sbr.rel (0) target = $region9
    $region8: #{tpu_custom_call.1} parent=1 // pred_region
      %s38 = ssub.s32 128, 128
      %39 = vsyncadd [#allocation7], %s38
      %s41 = sshll.u32 [#allocation6], 4
      %s42 = int_to_ptr.vmem [resolvable:$true] %s41
      %44 = dma.hbm_to_vmem [thread:$0]  %s1, 128, %s42, [#allocation7]
    $region9: #{tpu_custom_call.1} parent=1 // pred_fallthru
      _
    // Predicated region
    $region10: #{tpu_custom_call.1} parent=1 // pred_check
      _
    $region11: #{tpu_custom_call.1} parent=1 // pred_check_branch
      %46 = sbr.rel (0) target = $region13
    $region12: #{tpu_custom_call.1} parent=1 // pred_region
      %s48 = ssub.s32 24576, 24576
      %49 = vsyncadd [#allocation7], %s48
      %s50 = sshll.u32 [#allocation8], 4
      %s51 = int_to_ptr.vmem [resolvable:$true] %s50
      %56 = dma.hbm_to_vmem [thread:$0]  %s2, 24576, %s51, [#allocation7], 256, 256, 16
    $region13: #{tpu_custom_call.1} parent=1 // pred_fallthru
      _
    // Predicated region
    $region14: #{tpu_custom_call.1} parent=1 // pred_check
      _
    $region15: #{tpu_custom_call.1} parent=1 // pred_check_branch
      %58 = sbr.rel (0) target = $region17
    $region16: #{tpu_custom_call.1} parent=1 // pred_region
      _
    $region17: #{tpu_custom_call.1} parent=1 // pred_fallthru
      _
    // Predicated region
    $region18: #{tpu_custom_call.1} parent=1 // pred_check
      _
    $region19: #{tpu_custom_call.1} parent=1 // pred_check_branch
      %60 = sbr.rel (0) target = $region21
    $region20: #{tpu_custom_call.1} parent=1 // pred_region
      %s62 = ssub.s32 4096, 4096
      %63 = vsyncadd [#allocation10], %s62
      %s64 = sshll.u32 [#allocation9], 4
      %s65 = int_to_ptr.vmem [resolvable:$true] %s64
      %70 = dma.hbm_to_vmem [thread:$0]  %s4, 4096, %s65, [#allocation10], 128, 128, 8
    $region21: #{tpu_custom_call.1} parent=1 // pred_fallthru
      _
    // Predicated region
    $region22: #{tpu_custom_call.1} parent=1 // pred_check
      _
    $region23: #{tpu_custom_call.1} parent=1 // pred_check_branch
      %72 = sbr.rel (0) target = $region25
    $region24: #{tpu_custom_call.1} parent=1 // pred_region
      _
    $region25: #{tpu_custom_call.1} parent=1 // pred_fallthru
      _
    // Predicated region
    $region26: #{tpu_custom_call.1} parent=1 // pred_check
      _
    $region27: #{tpu_custom_call.1} parent=1 // pred_check_branch
      %74 = sbr.rel (0) target = $region29
    $region28: #{tpu_custom_call.1} parent=1 // pred_region
      %s76 = ssub.s32 1024, 1024
      %77 = vsyncadd [#allocation10], %s76
      %s78 = sshll.u32 [#allocation11], 4
      %s79 = int_to_ptr.vmem [resolvable:$true] %s78
      %84 = dma.hbm_to_vmem [thread:$0]  %s6, 1024, %s79, [#allocation10], 128, 128, 8
    $region29: #{tpu_custom_call.1} parent=1 // pred_fallthru
      _
    // Predicated region
    $region30: #{tpu_custom_call.1} parent=1 // pred_check
      _
    $region31: #{tpu_custom_call.1} parent=1 // pred_check_branch
      %86 = sbr.rel (0) target = $region33
    $region32: #{tpu_custom_call.1} parent=1 // pred_region
      _
    $region33: #{tpu_custom_call.1} parent=1 // pred_fallthru
      _
    // Predicated region
    $region34: #{tpu_custom_call.1} parent=1 // pred_check
      _
    $region35: #{tpu_custom_call.1} parent=1 // pred_check_branch
      %88 = sbr.rel (0) target = $region37
    $region36: #{tpu_custom_call.1} parent=1 // pred_region
      %s90 = ssub.s32 1024, 1024
      %91 = vsyncadd [#allocation13], %s90
      %s92 = sshll.u32 [#allocation12], 4
      %s93 = int_to_ptr.vmem [resolvable:$true] %s92
      %98 = dma.hbm_to_vmem [thread:$0]  %s8, 1024, %s93, [#allocation13], 128, 128, 8
    $region37: #{tpu_custom_call.1} parent=1 // pred_fallthru
      _
    // Predicated region
    $region38: #{tpu_custom_call.1} parent=1 // pred_check
      _
    $region39: #{tpu_custom_call.1} parent=1 // pred_check_branch
      %100 = sbr.rel (0) target = $region41
    $region40: #{tpu_custom_call.1} parent=1 // pred_region
      _
    $region41: #{tpu_custom_call.1} parent=1 // pred_fallthru
      _
    // Predicated region
    $region42: #{tpu_custom_call.1} parent=1 // pred_check
      _
    $region43: #{tpu_custom_call.1} parent=1 // pred_check_branch
      %102 = sbr.rel (0) target = $region45
    $region44: #{tpu_custom_call.1} parent=1 // pred_region
      _
    $region45: #{tpu_custom_call.1} parent=1 // pred_fallthru
      _
    // Predicated region
    $region46: #{tpu_custom_call.1} parent=1 // pred_check
      _
    $region47: #{tpu_custom_call.1} parent=1 // pred_check_branch
      %104 = sbr.rel (0) target = $region49
    $region48: #{tpu_custom_call.1} parent=1 // pred_region
      _
    $region49: #{tpu_custom_call.1} parent=1 // pred_fallthru
      _
    // Predicated region
    $region50: #{tpu_custom_call.1} parent=1 // pred_check
      _
    $region51: #{tpu_custom_call.1} parent=1 // pred_check_branch
      %106 = sbr.rel (0) target = $region53
    $region52: #{tpu_custom_call.1} parent=1 // pred_region
      _
    $region53: #{tpu_custom_call.1} parent=1 // pred_fallthru
      _
    // Predicated region
    $region54: #{tpu_custom_call.1} parent=1 // pred_check
      _
    $region55: #{tpu_custom_call.1} parent=1 // pred_check_branch
      %108 = sbr.rel (0) target = $region57
    $region56: #{tpu_custom_call.1} parent=1 // pred_region
      _
    $region57: #{tpu_custom_call.1} parent=1 // pred_fallthru
      _
    // Predicated region
    $region58: #{tpu_custom_call.1} parent=1 // pred_check
      _
    $region59: #{tpu_custom_call.1} parent=1 // pred_check_branch
      %110 = sbr.rel (0) target = $region61
    $region60: #{tpu_custom_call.1} parent=1 // pred_region
      %111 = dma.done [#allocation4], 768
    $region61: #{tpu_custom_call.1} parent=1 // pred_fallthru
      _
    // Predicated region
    $region62: #{tpu_custom_call.1} parent=1 // pred_check
      _
    $region63: #{tpu_custom_call.1} parent=1 // pred_check_branch
      %113 = sbr.rel (0) target = $region65
    $region64: #{tpu_custom_call.1} parent=1 // pred_region
      %114 = dma.done [#allocation7], 128
    $region65: #{tpu_custom_call.1} parent=1 // pred_fallthru
      _
    // Predicated region
    $region66: #{tpu_custom_call.1} parent=1 // pred_check
      _
    $region67: #{tpu_custom_call.1} parent=1 // pred_check_branch
      %116 = sbr.rel (0) target = $region69
    $region68: #{tpu_custom_call.1} parent=1 // pred_region
      %117 = dma.done [#allocation7], 24576
    $region69: #{tpu_custom_call.1} parent=1 // pred_fallthru
      _
    // Predicated region
    $region70: #{tpu_custom_call.1} parent=1 // pred_check
      _
    $region71: #{tpu_custom_call.1} parent=1 // pred_check_branch
      %119 = sbr.rel (0) target = $region73
    $region72: #{tpu_custom_call.1} parent=1 // pred_region
      %120 = dma.done [#allocation10], 4096
    $region73: #{tpu_custom_call.1} parent=1 // pred_fallthru
      _
    // Predicated region
    $region74: #{tpu_custom_call.1} parent=1 // pred_check
      _
    $region75: #{tpu_custom_call.1} parent=1 // pred_check_branch
      %122 = sbr.rel (0) target = $region77
    $region76: #{tpu_custom_call.1} parent=1 // pred_region
      %123 = dma.done [#allocation10], 1024
    $region77: #{tpu_custom_call.1} parent=1 // pred_fallthru
      _
    // Predicated region
    $region78: #{tpu_custom_call.1} parent=1 // pred_check
      _
    $region79: #{tpu_custom_call.1} parent=1 // pred_check_branch
      %125 = sbr.rel (0) target = $region81
    $region80: #{tpu_custom_call.1} parent=1 // pred_region
      %126 = dma.done [#allocation13], 1024
    $region81: #{tpu_custom_call.1} parent=1 // pred_fallthru
      _
    %v127 = vld [vmem:[#allocation3] sm:$0xff]
    %v128 = vld [vmem:[#allocation3 + $0x8] sm:$0xff]
    %v129 = vld [vmem:[#allocation3 + $0x10] sm:$0xff]
    %v130 = vld [vmem:[#allocation3 + $0x18] sm:$0xff]
    %v131 = vld [vmem:[#allocation3 + $0x20] sm:$0xff]
    %v132 = vld [vmem:[#allocation3 + $0x28] sm:$0xff]
    %v133 = vld [vmem:[#allocation8] sm:$0xff]
    %v134 = vld [vmem:[#allocation8 + $0x8] sm:$0xff]
    %v135 = vld [vmem:[#allocation8 + $0x10] sm:$0xff]
    %v136 = vld [vmem:[#allocation8 + $0x18] sm:$0xff]
    %v137 = vld [vmem:[#allocation8 + $0x20] sm:$0xff]
    %v138 = vld [vmem:[#allocation8 + $0x28] sm:$0xff]
    %v139 = vld [vmem:[#allocation8 + $0x30] sm:$0xff]
    %v140 = vld [vmem:[#allocation8 + $0x38] sm:$0xff]
    %v141 = vld [vmem:[#allocation8 + $0x40] sm:$0xff]
    %v142 = vld [vmem:[#allocation8 + $0x48] sm:$0xff]
    %v143 = vld [vmem:[#allocation8 + $0x50] sm:$0xff]
    %v144 = vld [vmem:[#allocation8 + $0x58] sm:$0xff]
    %v145 = vld [vmem:[#allocation8 + $0x60] sm:$0xff]
    %v146 = vld [vmem:[#allocation8 + $0x68] sm:$0xff]
    %v147 = vld [vmem:[#allocation8 + $0x70] sm:$0xff]
    %v148 = vld [vmem:[#allocation8 + $0x78] sm:$0xff]
    %v149 = vld [vmem:[#allocation8 + $0x80] sm:$0xff]
    %v150 = vld [vmem:[#allocation8 + $0x88] sm:$0xff]
    %v151 = vld [vmem:[#allocation8 + $0x90] sm:$0xff]
    %v152 = vld [vmem:[#allocation8 + $0x98] sm:$0xff]
    %v153 = vld [vmem:[#allocation8 + $0xa0] sm:$0xff]
    %v154 = vld [vmem:[#allocation8 + $0xa8] sm:$0xff]
    %v155 = vld [vmem:[#allocation8 + $0xb0] sm:$0xff]
    %v156 = vld [vmem:[#allocation8 + $0xb8] sm:$0xff]
    %v157 = vld [vmem:[#allocation8 + $0xc0] sm:$0xff]
    %v158 = vld [vmem:[#allocation8 + $0xc8] sm:$0xff]
    %v159 = vld [vmem:[#allocation8 + $0xd0] sm:$0xff]
    %v160 = vld [vmem:[#allocation8 + $0xd8] sm:$0xff]
    %v161 = vld [vmem:[#allocation8 + $0xe0] sm:$0xff]
    %v162 = vld [vmem:[#allocation8 + $0xe8] sm:$0xff]
    %v163 = vld [vmem:[#allocation8 + $0xf0] sm:$0xff]
    %v164 = vld [vmem:[#allocation8 + $0xf8] sm:$0xff]
    %v165 = vld [vmem:[#allocation8 + $0x100] sm:$0xff]
    %v166 = vld [vmem:[#allocation8 + $0x108] sm:$0xff]
    %v167 = vld [vmem:[#allocation8 + $0x110] sm:$0xff]
    %v168 = vld [vmem:[#allocation8 + $0x118] sm:$0xff]
    %v169 = vld [vmem:[#allocation8 + $0x120] sm:$0xff]
    %v170 = vld [vmem:[#allocation8 + $0x128] sm:$0xff]
    %v171 = vld [vmem:[#allocation8 + $0x130] sm:$0xff]
    %v172 = vld [vmem:[#allocation8 + $0x138] sm:$0xff]
    %v173 = vld [vmem:[#allocation8 + $0x140] sm:$0xff]
    %v174 = vld [vmem:[#allocation8 + $0x148] sm:$0xff]
    %v175 = vld [vmem:[#allocation8 + $0x150] sm:$0xff]
    %v176 = vld [vmem:[#allocation8 + $0x158] sm:$0xff]
    %v177 = vld [vmem:[#allocation8 + $0x160] sm:$0xff]
    %v178 = vld [vmem:[#allocation8 + $0x168] sm:$0xff]
    %v179 = vld [vmem:[#allocation8 + $0x170] sm:$0xff]
    %v180 = vld [vmem:[#allocation8 + $0x178] sm:$0xff]
    %v181 = vld [vmem:[#allocation8 + $0x180] sm:$0xff]
    %v182 = vld [vmem:[#allocation8 + $0x188] sm:$0xff]
    %v183 = vld [vmem:[#allocation8 + $0x190] sm:$0xff]
    %v184 = vld [vmem:[#allocation8 + $0x198] sm:$0xff]
    %v185 = vld [vmem:[#allocation8 + $0x1a0] sm:$0xff]
    %v186 = vld [vmem:[#allocation8 + $0x1a8] sm:$0xff]
    %v187 = vld [vmem:[#allocation8 + $0x1b0] sm:$0xff]
    %v188 = vld [vmem:[#allocation8 + $0x1b8] sm:$0xff]
    %v189 = vld [vmem:[#allocation8 + $0x1c0] sm:$0xff]
    %v190 = vld [vmem:[#allocation8 + $0x1c8] sm:$0xff]
    %v191 = vld [vmem:[#allocation8 + $0x1d0] sm:$0xff]
    %v192 = vld [vmem:[#allocation8 + $0x1d8] sm:$0xff]
    %v193 = vld [vmem:[#allocation8 + $0x1e0] sm:$0xff]
    %v194 = vld [vmem:[#allocation8 + $0x1e8] sm:$0xff]
    %v195 = vld [vmem:[#allocation8 + $0x1f0] sm:$0xff]
    %v196 = vld [vmem:[#allocation8 + $0x1f8] sm:$0xff]
    %v197 = vld [vmem:[#allocation8 + $0x200] sm:$0xff]
    %v198 = vld [vmem:[#allocation8 + $0x208] sm:$0xff]
    %v199 = vld [vmem:[#allocation8 + $0x210] sm:$0xff]
    %v200 = vld [vmem:[#allocation8 + $0x218] sm:$0xff]
    %v201 = vld [vmem:[#allocation8 + $0x220] sm:$0xff]
    %v202 = vld [vmem:[#allocation8 + $0x228] sm:$0xff]
    %v203 = vld [vmem:[#allocation8 + $0x230] sm:$0xff]
    %v204 = vld [vmem:[#allocation8 + $0x238] sm:$0xff]
    %v205 = vld [vmem:[#allocation8 + $0x240] sm:$0xff]
    %v206 = vld [vmem:[#allocation8 + $0x248] sm:$0xff]
    %v207 = vld [vmem:[#allocation8 + $0x250] sm:$0xff]
    %v208 = vld [vmem:[#allocation8 + $0x258] sm:$0xff]
    %v209 = vld [vmem:[#allocation8 + $0x260] sm:$0xff]
    %v210 = vld [vmem:[#allocation8 + $0x268] sm:$0xff]
    %v211 = vld [vmem:[#allocation8 + $0x270] sm:$0xff]
    %v212 = vld [vmem:[#allocation8 + $0x278] sm:$0xff]
    %v213 = vld [vmem:[#allocation8 + $0x280] sm:$0xff]
    %v214 = vld [vmem:[#allocation8 + $0x288] sm:$0xff]
    %v215 = vld [vmem:[#allocation8 + $0x290] sm:$0xff]
    %v216 = vld [vmem:[#allocation8 + $0x298] sm:$0xff]
    %v217 = vld [vmem:[#allocation8 + $0x2a0] sm:$0xff]
    %v218 = vld [vmem:[#allocation8 + $0x2a8] sm:$0xff]
    %v219 = vld [vmem:[#allocation8 + $0x2b0] sm:$0xff]
    %v220 = vld [vmem:[#allocation8 + $0x2b8] sm:$0xff]
    %v221 = vld [vmem:[#allocation8 + $0x2c0] sm:$0xff]
    %v222 = vld [vmem:[#allocation8 + $0x2c8] sm:$0xff]
    %v223 = vld [vmem:[#allocation8 + $0x2d0] sm:$0xff]
    %v224 = vld [vmem:[#allocation8 + $0x2d8] sm:$0xff]
    %v225 = vld [vmem:[#allocation8 + $0x2e0] sm:$0xff]
    %v226 = vld [vmem:[#allocation8 + $0x2e8] sm:$0xff]
    %v227 = vld [vmem:[#allocation8 + $0x2f0] sm:$0xff]
    %v228 = vld [vmem:[#allocation8 + $0x2f8] sm:$0xff]
    %v229 = vld [vmem:[#allocation8 + $0x300] sm:$0xff]
    %v230 = vld [vmem:[#allocation8 + $0x308] sm:$0xff]
    %v231 = vld [vmem:[#allocation8 + $0x310] sm:$0xff]
    %v232 = vld [vmem:[#allocation8 + $0x318] sm:$0xff]
    %v233 = vld [vmem:[#allocation8 + $0x320] sm:$0xff]
    %v234 = vld [vmem:[#allocation8 + $0x328] sm:$0xff]
    %v235 = vld [vmem:[#allocation8 + $0x330] sm:$0xff]
    %v236 = vld [vmem:[#allocation8 + $0x338] sm:$0xff]
    %v237 = vld [vmem:[#allocation8 + $0x340] sm:$0xff]
    %v238 = vld [vmem:[#allocation8 + $0x348] sm:$0xff]
    %v239 = vld [vmem:[#allocation8 + $0x350] sm:$0xff]
    %v240 = vld [vmem:[#allocation8 + $0x358] sm:$0xff]
    %v241 = vld [vmem:[#allocation8 + $0x360] sm:$0xff]
    %v242 = vld [vmem:[#allocation8 + $0x368] sm:$0xff]
    %v243 = vld [vmem:[#allocation8 + $0x370] sm:$0xff]
    %v244 = vld [vmem:[#allocation8 + $0x378] sm:$0xff]
    %v245 = vld [vmem:[#allocation8 + $0x380] sm:$0xff]
    %v246 = vld [vmem:[#allocation8 + $0x388] sm:$0xff]
    %v247 = vld [vmem:[#allocation8 + $0x390] sm:$0xff]
    %v248 = vld [vmem:[#allocation8 + $0x398] sm:$0xff]
    %v249 = vld [vmem:[#allocation8 + $0x3a0] sm:$0xff]
    %v250 = vld [vmem:[#allocation8 + $0x3a8] sm:$0xff]
    %v251 = vld [vmem:[#allocation8 + $0x3b0] sm:$0xff]
    %v252 = vld [vmem:[#allocation8 + $0x3b8] sm:$0xff]
    %v253 = vld [vmem:[#allocation8 + $0x3c0] sm:$0xff]
    %v254 = vld [vmem:[#allocation8 + $0x3c8] sm:$0xff]
    %v255 = vld [vmem:[#allocation8 + $0x3d0] sm:$0xff]
    %v256 = vld [vmem:[#allocation8 + $0x3d8] sm:$0xff]
    %v257 = vld [vmem:[#allocation8 + $0x3e0] sm:$0xff]
    %v258 = vld [vmem:[#allocation8 + $0x3e8] sm:$0xff]
    %v259 = vld [vmem:[#allocation8 + $0x3f0] sm:$0xff]
    %v260 = vld [vmem:[#allocation8 + $0x3f8] sm:$0xff]
    %v261 = vld [vmem:[#allocation8 + $0x400] sm:$0xff]
    %v262 = vld [vmem:[#allocation8 + $0x408] sm:$0xff]
    %v263 = vld [vmem:[#allocation8 + $0x410] sm:$0xff]
    %v264 = vld [vmem:[#allocation8 + $0x418] sm:$0xff]
    %v265 = vld [vmem:[#allocation8 + $0x420] sm:$0xff]
    %v266 = vld [vmem:[#allocation8 + $0x428] sm:$0xff]
    %v267 = vld [vmem:[#allocation8 + $0x430] sm:$0xff]
    %v268 = vld [vmem:[#allocation8 + $0x438] sm:$0xff]
    %v269 = vld [vmem:[#allocation8 + $0x440] sm:$0xff]
    %v270 = vld [vmem:[#allocation8 + $0x448] sm:$0xff]
    %v271 = vld [vmem:[#allocation8 + $0x450] sm:$0xff]
    %v272 = vld [vmem:[#allocation8 + $0x458] sm:$0xff]
    %v273 = vld [vmem:[#allocation8 + $0x460] sm:$0xff]
    %v274 = vld [vmem:[#allocation8 + $0x468] sm:$0xff]
    %v275 = vld [vmem:[#allocation8 + $0x470] sm:$0xff]
    %v276 = vld [vmem:[#allocation8 + $0x478] sm:$0xff]
    %v277 = vld [vmem:[#allocation8 + $0x480] sm:$0xff]
    %v278 = vld [vmem:[#allocation8 + $0x488] sm:$0xff]
    %v279 = vld [vmem:[#allocation8 + $0x490] sm:$0xff]
    %v280 = vld [vmem:[#allocation8 + $0x498] sm:$0xff]
    %v281 = vld [vmem:[#allocation8 + $0x4a0] sm:$0xff]
    %v282 = vld [vmem:[#allocation8 + $0x4a8] sm:$0xff]
    %v283 = vld [vmem:[#allocation8 + $0x4b0] sm:$0xff]
    %v284 = vld [vmem:[#allocation8 + $0x4b8] sm:$0xff]
    %v285 = vld [vmem:[#allocation8 + $0x4c0] sm:$0xff]
    %v286 = vld [vmem:[#allocation8 + $0x4c8] sm:$0xff]
    %v287 = vld [vmem:[#allocation8 + $0x4d0] sm:$0xff]
    %v288 = vld [vmem:[#allocation8 + $0x4d8] sm:$0xff]
    %v289 = vld [vmem:[#allocation8 + $0x4e0] sm:$0xff]
    %v290 = vld [vmem:[#allocation8 + $0x4e8] sm:$0xff]
    %v291 = vld [vmem:[#allocation8 + $0x4f0] sm:$0xff]
    %v292 = vld [vmem:[#allocation8 + $0x4f8] sm:$0xff]
    %v293 = vld [vmem:[#allocation8 + $0x500] sm:$0xff]
    %v294 = vld [vmem:[#allocation8 + $0x508] sm:$0xff]
    %v295 = vld [vmem:[#allocation8 + $0x510] sm:$0xff]
    %v296 = vld [vmem:[#allocation8 + $0x518] sm:$0xff]
    %v297 = vld [vmem:[#allocation8 + $0x520] sm:$0xff]
    %v298 = vld [vmem:[#allocation8 + $0x528] sm:$0xff]
    %v299 = vld [vmem:[#allocation8 + $0x530] sm:$0xff]
    %v300 = vld [vmem:[#allocation8 + $0x538] sm:$0xff]
    %v301 = vld [vmem:[#allocation8 + $0x540] sm:$0xff]
    %v302 = vld [vmem:[#allocation8 + $0x548] sm:$0xff]
    %v303 = vld [vmem:[#allocation8 + $0x550] sm:$0xff]
    %v304 = vld [vmem:[#allocation8 + $0x558] sm:$0xff]
    %v305 = vld [vmem:[#allocation8 + $0x560] sm:$0xff]
    %v306 = vld [vmem:[#allocation8 + $0x568] sm:$0xff]
    %v307 = vld [vmem:[#allocation8 + $0x570] sm:$0xff]
    %v308 = vld [vmem:[#allocation8 + $0x578] sm:$0xff]
    %v309 = vld [vmem:[#allocation8 + $0x580] sm:$0xff]
    %v310 = vld [vmem:[#allocation8 + $0x588] sm:$0xff]
    %v311 = vld [vmem:[#allocation8 + $0x590] sm:$0xff]
    %v312 = vld [vmem:[#allocation8 + $0x598] sm:$0xff]
    %v313 = vld [vmem:[#allocation8 + $0x5a0] sm:$0xff]
    %v314 = vld [vmem:[#allocation8 + $0x5a8] sm:$0xff]
    %v315 = vld [vmem:[#allocation8 + $0x5b0] sm:$0xff]
    %v316 = vld [vmem:[#allocation8 + $0x5b8] sm:$0xff]
    %v317 = vld [vmem:[#allocation8 + $0x5c0] sm:$0xff]
    %v318 = vld [vmem:[#allocation8 + $0x5c8] sm:$0xff]
    %v319 = vld [vmem:[#allocation8 + $0x5d0] sm:$0xff]
    %v320 = vld [vmem:[#allocation8 + $0x5d8] sm:$0xff]
    %v321 = vld [vmem:[#allocation8 + $0x5e0] sm:$0xff]
    %v322 = vld [vmem:[#allocation8 + $0x5e8] sm:$0xff]
    %v323 = vld [vmem:[#allocation8 + $0x5f0] sm:$0xff]
    %v324 = vld [vmem:[#allocation8 + $0x5f8] sm:$0xff]
    %v325 = vld [vmem:[%s3] sm:$0x3]
    %v327 = vlaneseq
    %v328 = vshrl.u32 %v327, 7
    %v329 = vsub.s32 0, %v328
    %v330 = vrot.slane %v325, %v329
    %v331 = vlaneseq
    %v332 = vshrl.u32 %v331, 7
    %v333 = vsub.s32 1, %v332
    %v334 = vrot.slane %v325, %v333
    %337 = vmatprep.subr.mxu0 %v134
    %338 = vmatpush1.msra.mxu0 %v133
    %339 = vmatprep.subr.mxu0 %v136
    %340 = vmatpush1.msra.mxu0 %v135
    %341 = vmatprep.subr.mxu0 %v138
    %342 = vmatpush1.msra.mxu0 %v137
    %343 = vmatprep.subr.mxu0 %v140
    %344 = vmatpush1.msra.mxu0 %v139
    %345 = vmatprep.subr.mxu0 %v142
    %346 = vmatpush1.msra.mxu0 %v141
    %347 = vmatprep.subr.mxu0 %v144
    %348 = vmatpush1.msra.mxu0 %v143
    %349 = vmatprep.subr.mxu0 %v146
    %350 = vmatpush1.msra.mxu0 %v145
    %351 = vmatprep.subr.mxu0 %v148
    %352 = vmatpush1.msra.mxu0 %v147
    %353 = vmatprep.subr.mxu0 %v150
    %354 = vmatpush1.msra.mxu0 %v149
    %355 = vmatprep.subr.mxu0 %v152
    %356 = vmatpush1.msra.mxu0 %v151
    %357 = vmatprep.subr.mxu0 %v154
    %358 = vmatpush1.msra.mxu0 %v153
    %359 = vmatprep.subr.mxu0 %v156
    %360 = vmatpush1.msra.mxu0 %v155
    %361 = vmatprep.subr.mxu0 %v158
    %362 = vmatpush1.msra.mxu0 %v157
    %363 = vmatprep.subr.mxu0 %v160
    %364 = vmatpush1.msra.mxu0 %v159
    %365 = vmatprep.subr.mxu0 %v162
    %366 = vmatpush1.msra.mxu0 %v161
    %367 = vmatprep.subr.mxu0 %v164
    %368 = vmatpush1.msra.mxu0 %v163
    %369 = vmatprep.subr.mxu0 %v166
    %370 = vmatpush1.msra.mxu0 %v165
    %371 = vmatprep.subr.mxu0 %v168
    %372 = vmatpush1.msra.mxu0 %v167
    %373 = vmatprep.subr.mxu0 %v170
    %374 = vmatpush1.msra.mxu0 %v169
    %375 = vmatprep.subr.mxu0 %v172
    %376 = vmatpush1.msra.mxu0 %v171
    %377 = vmatprep.subr.mxu0 %v174
    %378 = vmatpush1.msra.mxu0 %v173
    %379 = vmatprep.subr.mxu0 %v176
    %380 = vmatpush1.msra.mxu0 %v175
    %381 = vmatprep.subr.mxu0 %v178
    %382 = vmatpush1.msra.mxu0 %v177
    %383 = vmatprep.subr.mxu0 %v180
    %384 = vmatpush1.msra.mxu0 %v179
    %385 = vmatprep.subr.mxu0 %v182
    %386 = vmatpush1.msra.mxu0 %v181
    %387 = vmatprep.subr.mxu0 %v184
    %388 = vmatpush1.msra.mxu0 %v183
    %389 = vmatprep.subr.mxu0 %v186
    %390 = vmatpush1.msra.mxu0 %v185
    %391 = vmatprep.subr.mxu0 %v188
    %392 = vmatpush1.msra.mxu0 %v187
    %393 = vmatprep.subr.mxu0 %v190
    %394 = vmatpush1.msra.mxu0 %v189
    %395 = vmatprep.subr.mxu0 %v192
    %396 = vmatpush1.msra.mxu0 %v191
    %397 = vmatprep.subr.mxu0 %v194
    %398 = vmatpush1.msra.mxu0 %v193
    %399 = vmatprep.subr.mxu0 %v196
    %400 = vmatpush1.msra.mxu0 %v195
    %401 = vmatprep.mubr.f32.mxu0 %v128
    %402 = vmatmul.mubr.f32.gmra.mrb[0].mxu0 %v127
    %v403 = vpop.f32.mrb[0].mxu0
    %v404 = vadd.f32 %v330, %v403
    %v405 = vpop.f32.mrb[0].mxu0
    %v406 = vadd.f32 %v334, %v405
    %407 = vdwg.mxu0
    %408 = vmatprep.subr.mxu0 %v198
    %409 = vmatpush1.msra.mxu0 %v197
    %410 = vmatprep.subr.mxu0 %v200
    %411 = vmatpush1.msra.mxu0 %v199
    %412 = vmatprep.subr.mxu0 %v202
    %413 = vmatpush1.msra.mxu0 %v201
    %414 = vmatprep.subr.mxu0 %v204
    %415 = vmatpush1.msra.mxu0 %v203
    %416 = vmatprep.subr.mxu0 %v206
    %417 = vmatpush1.msra.mxu0 %v205
    %418 = vmatprep.subr.mxu0 %v208
    %419 = vmatpush1.msra.mxu0 %v207
    %420 = vmatprep.subr.mxu0 %v210
    %421 = vmatpush1.msra.mxu0 %v209
    %422 = vmatprep.subr.mxu0 %v212
    %423 = vmatpush1.msra.mxu0 %v211
    %424 = vmatprep.subr.mxu0 %v214
    %425 = vmatpush1.msra.mxu0 %v213
    %426 = vmatprep.subr.mxu0 %v216
    %427 = vmatpush1.msra.mxu0 %v215
    %428 = vmatprep.subr.mxu0 %v218
    %429 = vmatpush1.msra.mxu0 %v217
    %430 = vmatprep.subr.mxu0 %v220
    %431 = vmatpush1.msra.mxu0 %v219
    %432 = vmatprep.subr.mxu0 %v222
    %433 = vmatpush1.msra.mxu0 %v221
    %434 = vmatprep.subr.mxu0 %v224
    %435 = vmatpush1.msra.mxu0 %v223
    %436 = vmatprep.subr.mxu0 %v226
    %437 = vmatpush1.msra.mxu0 %v225
    %438 = vmatprep.subr.mxu0 %v228
    %439 = vmatpush1.msra.mxu0 %v227
    %440 = vmatprep.subr.mxu0 %v230
    %441 = vmatpush1.msra.mxu0 %v229
    %442 = vmatprep.subr.mxu0 %v232
    %443 = vmatpush1.msra.mxu0 %v231
    %444 = vmatprep.subr.mxu0 %v234
    %445 = vmatpush1.msra.mxu0 %v233
    %446 = vmatprep.subr.mxu0 %v236
    %447 = vmatpush1.msra.mxu0 %v235
    %448 = vmatprep.subr.mxu0 %v238
    %449 = vmatpush1.msra.mxu0 %v237
    %450 = vmatprep.subr.mxu0 %v240
    %451 = vmatpush1.msra.mxu0 %v239
    %452 = vmatprep.subr.mxu0 %v242
    %453 = vmatpush1.msra.mxu0 %v241
    %454 = vmatprep.subr.mxu0 %v244
    %455 = vmatpush1.msra.mxu0 %v243
    %456 = vmatprep.subr.mxu0 %v246
    %457 = vmatpush1.msra.mxu0 %v245
    %458 = vmatprep.subr.mxu0 %v248
    %459 = vmatpush1.msra.mxu0 %v247
    %460 = vmatprep.subr.mxu0 %v250
    %461 = vmatpush1.msra.mxu0 %v249
    %462 = vmatprep.subr.mxu0 %v252
    %463 = vmatpush1.msra.mxu0 %v251
    %464 = vmatprep.subr.mxu0 %v254
    %465 = vmatpush1.msra.mxu0 %v253
    %466 = vmatprep.subr.mxu0 %v256
    %467 = vmatpush1.msra.mxu0 %v255
    %468 = vmatprep.subr.mxu0 %v258
    %469 = vmatpush1.msra.mxu0 %v257
    %470 = vmatprep.subr.mxu0 %v260
    %471 = vmatpush1.msra.mxu0 %v259
    %472 = vmatprep.mubr.f32.mxu0 %v130
    %473 = vmatmul.mubr.f32.gmra.mrb[0].mxu0 %v129
    %v474 = vpop.f32.mrb[0].mxu0
    %v475 = vadd.f32 %v404, %v474
    %v476 = vpop.f32.mrb[0].mxu0
    %v477 = vadd.f32 %v406, %v476
    %478 = vdwg.mxu0
    %479 = vmatprep.subr.mxu0 %v262
    %480 = vmatpush1.msra.mxu0 %v261
    %481 = vmatprep.subr.mxu0 %v264
    %482 = vmatpush1.msra.mxu0 %v263
    %483 = vmatprep.subr.mxu0 %v266
    %484 = vmatpush1.msra.mxu0 %v265
    %485 = vmatprep.subr.mxu0 %v268
    %486 = vmatpush1.msra.mxu0 %v267
    %487 = vmatprep.subr.mxu0 %v270
    %488 = vmatpush1.msra.mxu0 %v269
    %489 = vmatprep.subr.mxu0 %v272
    %490 = vmatpush1.msra.mxu0 %v271
    %491 = vmatprep.subr.mxu0 %v274
    %492 = vmatpush1.msra.mxu0 %v273
    %493 = vmatprep.subr.mxu0 %v276
    %494 = vmatpush1.msra.mxu0 %v275
    %495 = vmatprep.subr.mxu0 %v278
    %496 = vmatpush1.msra.mxu0 %v277
    %497 = vmatprep.subr.mxu0 %v280
    %498 = vmatpush1.msra.mxu0 %v279
    %499 = vmatprep.subr.mxu0 %v282
    %500 = vmatpush1.msra.mxu0 %v281
    %501 = vmatprep.subr.mxu0 %v284
    %502 = vmatpush1.msra.mxu0 %v283
    %503 = vmatprep.subr.mxu0 %v286
    %504 = vmatpush1.msra.mxu0 %v285
    %505 = vmatprep.subr.mxu0 %v288
    %506 = vmatpush1.msra.mxu0 %v287
    %507 = vmatprep.subr.mxu0 %v290
    %508 = vmatpush1.msra.mxu0 %v289
    %509 = vmatprep.subr.mxu0 %v292
    %510 = vmatpush1.msra.mxu0 %v291
    %511 = vmatprep.subr.mxu0 %v294
    %512 = vmatpush1.msra.mxu0 %v293
    %513 = vmatprep.subr.mxu0 %v296
    %514 = vmatpush1.msra.mxu0 %v295
    %515 = vmatprep.subr.mxu0 %v298
    %516 = vmatpush1.msra.mxu0 %v297
    %517 = vmatprep.subr.mxu0 %v300
    %518 = vmatpush1.msra.mxu0 %v299
    %519 = vmatprep.subr.mxu0 %v302
    %520 = vmatpush1.msra.mxu0 %v301
    %521 = vmatprep.subr.mxu0 %v304
    %522 = vmatpush1.msra.mxu0 %v303
    %523 = vmatprep.subr.mxu0 %v306
    %524 = vmatpush1.msra.mxu0 %v305
    %525 = vmatprep.subr.mxu0 %v308
    %526 = vmatpush1.msra.mxu0 %v307
    %527 = vmatprep.subr.mxu0 %v310
    %528 = vmatpush1.msra.mxu0 %v309
    %529 = vmatprep.subr.mxu0 %v312
    %530 = vmatpush1.msra.mxu0 %v311
    %531 = vmatprep.subr.mxu0 %v314
    %532 = vmatpush1.msra.mxu0 %v313
    %533 = vmatprep.subr.mxu0 %v316
    %534 = vmatpush1.msra.mxu0 %v315
    %535 = vmatprep.subr.mxu0 %v318
    %536 = vmatpush1.msra.mxu0 %v317
    %537 = vmatprep.subr.mxu0 %v320
    %538 = vmatpush1.msra.mxu0 %v319
    %539 = vmatprep.subr.mxu0 %v322
    %540 = vmatpush1.msra.mxu0 %v321
    %541 = vmatprep.subr.mxu0 %v324
    %542 = vmatpush1.msra.mxu0 %v323
    %543 = vmatprep.mubr.f32.mxu0 %v132
    %544 = vmatmul.mubr.f32.gmra.mrb[0].mxu0 %v131
    %v545 = vpop.f32.mrb[0].mxu0
    %v546 = vadd.f32 %v475, %v545
    %v547 = vpop.f32.mrb[0].mxu0
    %v548 = vadd.f32 %v477, %v547
    %549 = vdwg.mxu0
    %v550 = vmax.f32 %v546, 0.0
    %v551 = vmax.f32 %v548, 0.0
    %v552 = vld [vmem:[#allocation9] sm:$0xff]
    %v553 = vld [vmem:[#allocation9 + $0x8] sm:$0xff]
    %v554 = vld [vmem:[#allocation9 + $0x10] sm:$0xff]
    %v555 = vld [vmem:[#allocation9 + $0x18] sm:$0xff]
    %v556 = vld [vmem:[#allocation9 + $0x20] sm:$0xff]
    %v557 = vld [vmem:[#allocation9 + $0x28] sm:$0xff]
    %v558 = vld [vmem:[#allocation9 + $0x30] sm:$0xff]
    %v559 = vld [vmem:[#allocation9 + $0x38] sm:$0xff]
    %v560 = vld [vmem:[#allocation9 + $0x40] sm:$0xff]
    %v561 = vld [vmem:[#allocation9 + $0x48] sm:$0xff]
    %v562 = vld [vmem:[#allocation9 + $0x50] sm:$0xff]
    %v563 = vld [vmem:[#allocation9 + $0x58] sm:$0xff]
    %v564 = vld [vmem:[#allocation9 + $0x60] sm:$0xff]
    %v565 = vld [vmem:[#allocation9 + $0x68] sm:$0xff]
    %v566 = vld [vmem:[#allocation9 + $0x70] sm:$0xff]
    %v567 = vld [vmem:[#allocation9 + $0x78] sm:$0xff]
    %v568 = vld [vmem:[#allocation9 + $0x80] sm:$0xff]
    %v569 = vld [vmem:[#allocation9 + $0x88] sm:$0xff]
    %v570 = vld [vmem:[#allocation9 + $0x90] sm:$0xff]
    %v571 = vld [vmem:[#allocation9 + $0x98] sm:$0xff]
    %v572 = vld [vmem:[#allocation9 + $0xa0] sm:$0xff]
    %v573 = vld [vmem:[#allocation9 + $0xa8] sm:$0xff]
    %v574 = vld [vmem:[#allocation9 + $0xb0] sm:$0xff]
    %v575 = vld [vmem:[#allocation9 + $0xb8] sm:$0xff]
    %v576 = vld [vmem:[#allocation9 + $0xc0] sm:$0xff]
    %v577 = vld [vmem:[#allocation9 + $0xc8] sm:$0xff]
    %v578 = vld [vmem:[#allocation9 + $0xd0] sm:$0xff]
    %v579 = vld [vmem:[#allocation9 + $0xd8] sm:$0xff]
    %v580 = vld [vmem:[#allocation9 + $0xe0] sm:$0xff]
    %v581 = vld [vmem:[#allocation9 + $0xe8] sm:$0xff]
    %v582 = vld [vmem:[#allocation9 + $0xf0] sm:$0xff]
    %v583 = vld [vmem:[#allocation9 + $0xf8] sm:$0xff]
    %v584 = vld [vmem:[%s5] sm:$0x1]
    %v586 = vlaneseq
    %v587 = vshrl.u32 %v586, 7
    %v588 = vsub.s32 0, %v587
    %v589 = vrot.slane %v584, %v588
    %591 = vmatprep.subr.mxu0 0.0
    %592 = vmatpush1.msra.mxu0 %v552
    %593 = vmatprep.subr.mxu0 0.0
    %594 = vmatpush1.msra.mxu0 %v553
    %595 = vmatprep.subr.mxu0 0.0
    %596 = vmatpush1.msra.mxu0 %v554
    %597 = vmatprep.subr.mxu0 0.0
    %598 = vmatpush1.msra.mxu0 %v555
    %599 = vmatprep.subr.mxu0 0.0
    %600 = vmatpush1.msra.mxu0 %v556
    %601 = vmatprep.subr.mxu0 0.0
    %602 = vmatpush1.msra.mxu0 %v557
    %603 = vmatprep.subr.mxu0 0.0
    %604 = vmatpush1.msra.mxu0 %v558
    %605 = vmatprep.subr.mxu0 0.0
    %606 = vmatpush1.msra.mxu0 %v559
    %607 = vmatprep.subr.mxu0 0.0
    %608 = vmatpush1.msra.mxu0 %v560
    %609 = vmatprep.subr.mxu0 0.0
    %610 = vmatpush1.msra.mxu0 %v561
    %611 = vmatprep.subr.mxu0 0.0
    %612 = vmatpush1.msra.mxu0 %v562
    %613 = vmatprep.subr.mxu0 0.0
    %614 = vmatpush1.msra.mxu0 %v563
    %615 = vmatprep.subr.mxu0 0.0
    %616 = vmatpush1.msra.mxu0 %v564
    %617 = vmatprep.subr.mxu0 0.0
    %618 = vmatpush1.msra.mxu0 %v565
    %619 = vmatprep.subr.mxu0 0.0
    %620 = vmatpush1.msra.mxu0 %v566
    %621 = vmatprep.subr.mxu0 0.0
    %622 = vmatpush1.msra.mxu0 %v567
    %623 = vmatprep.subr.mxu0 0.0
    %624 = vmatpush1.msra.mxu0 %v568
    %625 = vmatprep.subr.mxu0 0.0
    %626 = vmatpush1.msra.mxu0 %v569
    %627 = vmatprep.subr.mxu0 0.0
    %628 = vmatpush1.msra.mxu0 %v570
    %629 = vmatprep.subr.mxu0 0.0
    %630 = vmatpush1.msra.mxu0 %v571
    %631 = vmatprep.subr.mxu0 0.0
    %632 = vmatpush1.msra.mxu0 %v572
    %633 = vmatprep.subr.mxu0 0.0
    %634 = vmatpush1.msra.mxu0 %v573
    %635 = vmatprep.subr.mxu0 0.0
    %636 = vmatpush1.msra.mxu0 %v574
    %637 = vmatprep.subr.mxu0 0.0
    %638 = vmatpush1.msra.mxu0 %v575
    %639 = vmatprep.subr.mxu0 0.0
    %640 = vmatpush1.msra.mxu0 %v576
    %641 = vmatprep.subr.mxu0 0.0
    %642 = vmatpush1.msra.mxu0 %v577
    %643 = vmatprep.subr.mxu0 0.0
    %644 = vmatpush1.msra.mxu0 %v578
    %645 = vmatprep.subr.mxu0 0.0
    %646 = vmatpush1.msra.mxu0 %v579
    %647 = vmatprep.subr.mxu0 0.0
    %648 = vmatpush1.msra.mxu0 %v580
    %649 = vmatprep.subr.mxu0 0.0
    %650 = vmatpush1.msra.mxu0 %v581
    %651 = vmatprep.subr.mxu0 0.0
    %652 = vmatpush1.msra.mxu0 %v582
    %653 = vmatprep.subr.mxu0 0.0
    %654 = vmatpush1.msra.mxu0 %v583
    %655 = vmatprep.mubr.f32.mxu0 %v551
    %656 = vmatmul.mubr.f32.gmra.mrb[0].mxu0 %v550
    %v657 = vpop.f32.mrb[0].mxu0
    %v658 = vadd.f32 %v589, %v657
    %v659 = vpop.f32.mrb[0].mxu0
    %660 = vdwg.mxu0
    %v661 = vmax.f32 %v658, 0.0
    %v662 = vld [vmem:[#allocation6] sm:$0xff]
    %v663 = vld [vmem:[#allocation11] sm:$0xff]
    %v664 = vld [vmem:[#allocation11 + $0x8] sm:$0xff]
    %v665 = vld [vmem:[#allocation11 + $0x10] sm:$0xff]
    %v666 = vld [vmem:[#allocation11 + $0x18] sm:$0xff]
    %v667 = vld [vmem:[#allocation11 + $0x20] sm:$0xff]
    %v668 = vld [vmem:[#allocation11 + $0x28] sm:$0xff]
    %v669 = vld [vmem:[#allocation11 + $0x30] sm:$0xff]
    %v670 = vld [vmem:[#allocation11 + $0x38] sm:$0xff]
    %v671 = vld [vmem:[%s7] sm:$0x1]
    %v673 = vlaneseq
    %v674 = vshrl.u32 %v673, 7
    %v675 = vsub.s32 0, %v674
    %v676 = vrot.slane %v671, %v675
    %vm678 = vcmask 523264
    %v680 = vsel %vm678, %v662, 0
    %682 = vmatprep.subr.mxu0 0.0
    %683 = vmatpush1.msra.mxu0 %v663
    %684 = vmatprep.subr.mxu0 0.0
    %685 = vmatpush1.msra.mxu0 %v664
    %686 = vmatprep.subr.mxu0 0.0
    %687 = vmatpush1.msra.mxu0 %v665
    %688 = vmatprep.subr.mxu0 0.0
    %689 = vmatpush1.msra.mxu0 %v666
    %690 = vmatprep.subr.mxu0 0.0
    %691 = vmatpush1.msra.mxu0 %v667
    %692 = vmatprep.subr.mxu0 0.0
    %693 = vmatpush1.msra.mxu0 %v668
    %694 = vmatprep.subr.mxu0 0.0
    %695 = vmatpush1.msra.mxu0 %v669
    %696 = vmatprep.subr.mxu0 0.0
    %697 = vmatpush1.msra.mxu0 %v670
    %698 = vmatprep.subr.mxu0 0.0
    %699 = vmatpush1.msra.mxu0 0.0
    %700 = vmatprep.subr.mxu0 0.0
    %701 = vmatpush1.msra.mxu0 0.0
    %702 = vmatprep.subr.mxu0 0.0
    %703 = vmatpush1.msra.mxu0 0.0
    %704 = vmatprep.subr.mxu0 0.0
    %705 = vmatpush1.msra.mxu0 0.0
    %706 = vmatprep.subr.mxu0 0.0
    %707 = vmatpush1.msra.mxu0 0.0
    %708 = vmatprep.subr.mxu0 0.0
    %709 = vmatpush1.msra.mxu0 0.0
    %710 = vmatprep.subr.mxu0 0.0
    %711 = vmatpush1.msra.mxu0 0.0
    %712 = vmatprep.subr.mxu0 0.0
    %713 = vmatpush1.msra.mxu0 0.0
    %714 = vmatprep.subr.mxu0 0.0
    %715 = vmatpush1.msra.mxu0 0.0
    %716 = vmatprep.subr.mxu0 0.0
    %717 = vmatpush1.msra.mxu0 0.0
    %718 = vmatprep.subr.mxu0 0.0
    %719 = vmatpush1.msra.mxu0 0.0
    %720 = vmatprep.subr.mxu0 0.0
    %721 = vmatpush1.msra.mxu0 0.0
    %722 = vmatprep.subr.mxu0 0.0
    %723 = vmatpush1.msra.mxu0 0.0
    %724 = vmatprep.subr.mxu0 0.0
    %725 = vmatpush1.msra.mxu0 0.0
    %726 = vmatprep.subr.mxu0 0.0
    %727 = vmatpush1.msra.mxu0 0.0
    %728 = vmatprep.subr.mxu0 0.0
    %729 = vmatpush1.msra.mxu0 0.0
    %730 = vmatprep.subr.mxu0 0.0
    %731 = vmatpush1.msra.mxu0 0.0
    %732 = vmatprep.subr.mxu0 0.0
    %733 = vmatpush1.msra.mxu0 0.0
    %734 = vmatprep.subr.mxu0 0.0
    %735 = vmatpush1.msra.mxu0 0.0
    %736 = vmatprep.subr.mxu0 0.0
    %737 = vmatpush1.msra.mxu0 0.0
    %738 = vmatprep.subr.mxu0 0.0
    %739 = vmatpush1.msra.mxu0 0.0
    %740 = vmatprep.subr.mxu0 0.0
    %741 = vmatpush1.msra.mxu0 0.0
    %742 = vmatprep.subr.mxu0 0.0
    %743 = vmatpush1.msra.mxu0 0.0
    %744 = vmatprep.subr.mxu0 0.0
    %745 = vmatpush1.msra.mxu0 0.0
    %746 = vmatprep.mubr.f32.mxu0 0.0
    %747 = vmatmul.mubr.f32.gmra.mrb[0].mxu0 %v680
    %v748 = vpop.f32.mrb[0].mxu0
    %v749 = vadd.f32 %v676, %v748
    %v750 = vpop.f32.mrb[0].mxu0
    %751 = vdwg.mxu0
    %v752 = vmax.f32 %v749, 0.0
    %v753 = vld [vmem:[#allocation12] sm:$0xff]
    %v754 = vld [vmem:[#allocation12 + $0x8] sm:$0xff]
    %v755 = vld [vmem:[#allocation12 + $0x10] sm:$0xff]
    %v756 = vld [vmem:[#allocation12 + $0x18] sm:$0xff]
    %v757 = vld [vmem:[#allocation12 + $0x20] sm:$0xff]
    %v758 = vld [vmem:[#allocation12 + $0x28] sm:$0xff]
    %v759 = vld [vmem:[#allocation12 + $0x30] sm:$0xff]
    %v760 = vld [vmem:[#allocation12 + $0x38] sm:$0xff]
    %v761 = vld [vmem:[%s9] sm:$0x1]
    %v763 = vlaneseq
    %v764 = vshrl.u32 %v763, 7
    %v765 = vsub.s32 0, %v764
    %v766 = vrot.slane %v761, %v765
    %v769 = vsel %vm678, %v752, 0
    %771 = vmatprep.subr.mxu0 0.0
    %772 = vmatpush1.msra.mxu0 %v753
    %773 = vmatprep.subr.mxu0 0.0
    %774 = vmatpush1.msra.mxu0 %v754
    %775 = vmatprep.subr.mxu0 0.0
    %776 = vmatpush1.msra.mxu0 %v755
    %777 = vmatprep.subr.mxu0 0.0
    %778 = vmatpush1.msra.mxu0 %v756
    %779 = vmatprep.subr.mxu0 0.0
    %780 = vmatpush1.msra.mxu0 %v757
    %781 = vmatprep.subr.mxu0 0.0
    %782 = vmatpush1.msra.mxu0 %v758
    %783 = vmatprep.subr.mxu0 0.0
    %784 = vmatpush1.msra.mxu0 %v759
    %785 = vmatprep.subr.mxu0 0.0
    %786 = vmatpush1.msra.mxu0 %v760
    %787 = vmatprep.subr.mxu0 0.0
    %788 = vmatpush1.msra.mxu0 0.0
    %789 = vmatprep.subr.mxu0 0.0
    %790 = vmatpush1.msra.mxu0 0.0
    %791 = vmatprep.subr.mxu0 0.0
    %792 = vmatpush1.msra.mxu0 0.0
    %793 = vmatprep.subr.mxu0 0.0
    %794 = vmatpush1.msra.mxu0 0.0
    %795 = vmatprep.subr.mxu0 0.0
    %796 = vmatpush1.msra.mxu0 0.0
    %797 = vmatprep.subr.mxu0 0.0
    %798 = vmatpush1.msra.mxu0 0.0
    %799 = vmatprep.subr.mxu0 0.0
    %800 = vmatpush1.msra.mxu0 0.0
    %801 = vmatprep.subr.mxu0 0.0
    %802 = vmatpush1.msra.mxu0 0.0
    %803 = vmatprep.subr.mxu0 0.0
    %804 = vmatpush1.msra.mxu0 0.0
    %805 = vmatprep.subr.mxu0 0.0
    %806 = vmatpush1.msra.mxu0 0.0
    %807 = vmatprep.subr.mxu0 0.0
    %808 = vmatpush1.msra.mxu0 0.0
    %809 = vmatprep.subr.mxu0 0.0
    %810 = vmatpush1.msra.mxu0 0.0
    %811 = vmatprep.subr.mxu0 0.0
    %812 = vmatpush1.msra.mxu0 0.0
    %813 = vmatprep.subr.mxu0 0.0
    %814 = vmatpush1.msra.mxu0 0.0
    %815 = vmatprep.subr.mxu0 0.0
    %816 = vmatpush1.msra.mxu0 0.0
    %817 = vmatprep.subr.mxu0 0.0
    %818 = vmatpush1.msra.mxu0 0.0
    %819 = vmatprep.subr.mxu0 0.0
    %820 = vmatpush1.msra.mxu0 0.0
    %821 = vmatprep.subr.mxu0 0.0
    %822 = vmatpush1.msra.mxu0 0.0
    %823 = vmatprep.subr.mxu0 0.0
    %824 = vmatpush1.msra.mxu0 0.0
    %825 = vmatprep.subr.mxu0 0.0
    %826 = vmatpush1.msra.mxu0 0.0
    %827 = vmatprep.subr.mxu0 0.0
    %828 = vmatpush1.msra.mxu0 0.0
    %829 = vmatprep.subr.mxu0 0.0
    %830 = vmatpush1.msra.mxu0 0.0
    %831 = vmatprep.subr.mxu0 0.0
    %832 = vmatpush1.msra.mxu0 0.0
    %833 = vmatprep.subr.mxu0 0.0
    %834 = vmatpush1.msra.mxu0 0.0
    %835 = vmatprep.mubr.f32.mxu0 0.0
    %836 = vmatmul.mubr.f32.gmra.mrb[0].mxu0 %v769
    %v837 = vpop.f32.mrb[0].mxu0
    %v838 = vadd.f32 %v766, %v837
    %v839 = vpop.f32.mrb[0].mxu0
    %840 = vdwg.mxu0
    %v841 = vmax.f32 %v838, 0.0
    %842 = vrot.lane.b32.xlu0 %v662, 96
    %v843 = vpop.permute.xlu0 %842
    %v845 = vmul.f32 %v662, %v843
    %v846 = vld [vmem:[%s10] sm:$0x1]
    %v848 = vlaneseq
    %v849 = vshrl.u32 %v848, 7
    %v850 = vsub.s32 0, %v849
    %v851 = vrot.slane %v846, %v850
    %v853 = vmul.f32 %v845, %v851
    %vm854 = vcmask 261120
    %v855 = vsel %vm854, %v853, 0.0
    %856 = vadd.xlane.f32.xlu0 %v855
    %v857 = vpop.xlane.xlu0 %856
    %v858 = vld [vmem:[%s11] sm:$0x1]
    %v860 = vlaneseq
    %v861 = vshrl.u32 %v860, 7
    %v862 = vsub.s32 0, %v861
    %v863 = vrot.slane %v858, %v862
    %v865 = vmul.f32 %v841, %v863
    %v866 = vsel %vm678, %v865, 0.0
    %867 = vadd.xlane.f32.xlu0 %v866
    %v868 = vpop.xlane.xlu0 %867
    %v869 = vadd.f32 %v857, %v868
    %v870 = vld [vmem:[%s12] sm:$0x1]
    %v872 = vlaneseq
    %v873 = vshrl.u32 %v872, 7
    %v874 = vsub.s32 0, %v873
    %v875 = vrot.slane %v870, %v874
    %v877 = vmul.f32 %v661, %v875
    %878 = vadd.xlane.f32.xlu0 %v877
    %v879 = vpop.xlane.xlu0 %878
    %v880 = vadd.f32 %v869, %v879
    %s881 = sld [smem:[#allocation2]]
    %v882 = vstv %s881
    %v883 = vadd.f32 %v880, %v882
    %884 = vst [vmem:[#allocation14] sm:$0xff] %v883
    // Predicated region
    $region82: #{tpu_custom_call.1} parent=1 // pred_check
      _
    $region83: #{tpu_custom_call.1} parent=1 // pred_check_branch
      %886 = sbr.rel (0) target = $region85
    $region84: #{tpu_custom_call.1} parent=1 // pred_region
      %s888 = ssub.s32 128, 128
      %889 = vsyncadd [#allocation5], %s888
      %s891 = sshll.u32 [#allocation14], 4
      %s892 = int_to_ptr.vmem [resolvable:$true] %s891
      %894 = dma.vmem_to_hbm [thread:$0]  %s892, 128, %s14, [#allocation5]
    $region85: #{tpu_custom_call.1} parent=1 // pred_fallthru
      _
    // Predicated region
    $region86: #{tpu_custom_call.1} parent=1 // pred_check
      _
    $region87: #{tpu_custom_call.1} parent=1 // pred_check_branch
      %896 = sbr.rel (0) target = $region89
    $region88: #{tpu_custom_call.1} parent=1 // pred_region
      %897 = dma.done [#allocation5], 128
    $region89: #{tpu_custom_call.1} parent=1 // pred_fallthru
      _
    %898 = vsyncpa [#allocation4], 1
    %899 = vsyncpa [#allocation7], 1
    %900 = vsyncpa [#allocation10], 1
    %901 = vsyncpa [#allocation13], 1
    %902 = vsyncpa [#allocation5], 1

</llo_original>
